<compile_context>
chip_gen: v7x
topology: tpu7x:2x2x1
jax: 0.10.0
libtpu: 0.0.40
codegen_flags: <defaults>
</compile_context>

<pallas_src>
import jax
import jax.numpy as jnp
from jax.experimental import pallas as pl
from jax.experimental.pallas import tpu as pltpu


def dis_kernel(a_ref, b_ref, rel_ref, out_ref, acc_ref):
    k = pl.program_id(2)

    @pl.when(k == 0)
    def _():
        acc_ref[...] = jnp.zeros_like(acc_ref)

    # (TMN, TK) * (1, TK) broadcast on the VPU, fused with the MXU push.
    weighted = a_ref[...] * rel_ref[...]
    # Contract last dims of both tiles: (TMN, TK) x (TMN, TK) -> (TMN, TMN).
    acc_ref[...] += jax.lax.dot_general(
        weighted,
        b_ref[...],
        dimension_numbers=(((1,), (1,)), ((), ())),
        preferred_element_type=jnp.float32,
    )

    @pl.when(k == pl.num_programs(2) - 1)
    def _():
        out_ref[...] = acc_ref[...].astype(out_ref.dtype)


def _round_up(x, m):
    return ((x + m - 1) // m) * m


def dis_forward(fea, relations, *, tile_mn=256, tile_k=512):
    """Pallas implementation of Dis.forward.

    fea:       (N, D) float32
    relations: (D,)   float32
    returns (scores (N, N) float32, penalty scalar float32)
    """
    N, D = fea.shape

    # Tile sizes: 256-multiples for the big MXU when the problem is large
    # enough, otherwise the smallest (8,128)-legal padded size.
    TMN = min(tile_mn, _round_up(N, 128))
    TK = min(tile_k, _round_up(D, 128))
    Np = _round_up(N, TMN)
    Dp = _round_up(D, TK)

    fea_p = jnp.pad(fea.astype(jnp.float32), ((0, Np - N), (0, Dp - D)))
    rel_p = jnp.pad(relations.astype(jnp.float32), (0, Dp - D)).reshape(1, Dp)

    grid = (Np // TMN, Np // TMN, Dp // TK)

    scores_p = pl.pallas_call(
        dis_kernel,
        out_shape=jax.ShapeDtypeStruct((Np, Np), jnp.float32),
        grid_spec=pltpu.PrefetchScalarGridSpec(
            num_scalar_prefetch=0,
            grid=grid,
            in_specs=[
                pl.BlockSpec((TMN, TK), lambda i, j, k: (i, k)),   # A rows
                pl.BlockSpec((TMN, TK), lambda i, j, k: (j, k)),   # B rows
                pl.BlockSpec((1, TK), lambda i, j, k: (0, k)),     # relations
            ],
            out_specs=pl.BlockSpec((TMN, TMN), lambda i, j, k: (i, j)),
            scratch_shapes=[pltpu.VMEM((TMN, TMN), jnp.float32)],
        ),
        compiler_params=pltpu.CompilerParams(
            dimension_semantics=("parallel", "parallel", "arbitrary"),
        ),
    )(fea_p, fea_p, rel_p)

    scores = scores_p[:N, :N]
    # Penalty: tiny O(D) reduction, cheaper in plain JAX than in-kernel.
    penalty = jnp.sum(relations * relations)
    return scores, penalty


if __name__ == "__main__":
    key = jax.random.PRNGKey(0)
    k_fea, k_rel = jax.random.split(key)

    N, f_dim = 8, 32  # small shapes consistent with the module
    fea = jax.random.normal(k_fea, (N, f_dim), dtype=jnp.float32)
    # deterministic init mirroring torch.nn.init.normal_(relations)
    relations = jax.random.normal(k_rel, (f_dim,), dtype=jnp.float32)

    scores, penalty = dis_forward(fea, relations)
    jax.block_until_ready((scores, penalty))

    # reference check in plain JAX
    ref_scores = (fea * relations[None, :]) @ fea.T
    ref_penalty = jnp.sum(relations ** 2)
    assert scores.shape == (N, N)
    assert jnp.allclose(scores, ref_scores, atol=1e-4, rtol=1e-4)
    assert jnp.allclose(penalty, ref_penalty, atol=1e-4, rtol=1e-4)

    print("KERNEL_OK")
</pallas_src>

<mosaic_0001>
module attributes {stable_mosaic.version = 11 : i64} {
  func.func @dis_kernel(%arg0: i32, %arg1: i32, %arg2: i32, %arg3: memref<128x128xf32, #tpu.memory_space<vmem>>, %arg4: memref<128x128xf32, #tpu.memory_space<vmem>>, %arg5: memref<1x128xf32, #tpu.memory_space<vmem>>, %arg6: memref<128x128xf32, #tpu.memory_space<vmem>>, %arg7: memref<128x128xf32, #tpu.memory_space<vmem>>) attributes {dimension_semantics = [#tpu.dimension_semantics<parallel>, #tpu.dimension_semantics<parallel>, #tpu.dimension_semantics<arbitrary>], iteration_bounds = array<i64: 1, 1, 1>, scalar_prefetch = 0 : i64, scratch_operands = 1 : i64, tpu.core_type = #tpu.core_type<tc>, window_params = [{transform_indices = @transform_0, window_bounds = array<i64: 128, 128>}, {transform_indices = @transform_1, window_bounds = array<i64: 128, 128>}, {transform_indices = @transform_2, window_bounds = array<i64: 1, 128>}, {transform_indices = @transform_3, window_bounds = array<i64: 128, 128>}]} {
    %c0_i32 = arith.constant 0 : i32
    %0 = arith.cmpi eq, %arg2, %c0_i32 : i32
    %1 = arith.extui %0 : i1 to i32
    %c0_i32_0 = arith.constant 0 : i32
    %2 = arith.cmpi ne, %1, %c0_i32_0 : i32
    scf.if %2 {
      %cst_12 = arith.constant 0.000000e+00 : f32
      %15 = vector.broadcast %cst_12 : f32 to vector<128x128xf32>
      %c0_13 = arith.constant 0 : index
      %c0_14 = arith.constant 0 : index
      %16 = vector.load %arg7[%c0_13, %c0_14] : memref<128x128xf32, #tpu.memory_space<vmem>>, vector<128x128xf32>
      tpu.vector_store %arg7[%c0_13, %c0_14], %15 {strides = array<i32>} : memref<128x128xf32, #tpu.memory_space<vmem>>, vector<128x128xf32>,
    } else {
    }
    %c0 = arith.constant 0 : index
    %c0_1 = arith.constant 0 : index
    %3 = vector.load %arg3[%c0, %c0_1] : memref<128x128xf32, #tpu.memory_space<vmem>>, vector<128x128xf32>
    %c0_2 = arith.constant 0 : index
    %c0_3 = arith.constant 0 : index
    %4 = vector.load %arg5[%c0_2, %c0_3] : memref<1x128xf32, #tpu.memory_space<vmem>>, vector<1x128xf32>
    %5 = vector.broadcast %4 : vector<1x128xf32> to vector<128x128xf32>
    %6 = arith.mulf %3, %5 : vector<128x128xf32>
    %c0_4 = arith.constant 0 : index
    %c0_5 = arith.constant 0 : index
    %7 = vector.load %arg7[%c0_4, %c0_5] : memref<128x128xf32, #tpu.memory_space<vmem>>, vector<128x128xf32>
    %c0_6 = arith.constant 0 : index
    %c0_7 = arith.constant 0 : index
    %8 = vector.load %arg4[%c0_6, %c0_7] : memref<128x128xf32, #tpu.memory_space<vmem>>, vector<128x128xf32>
    %cst = arith.constant dense<0.000000e+00> : vector<128x128xf32>
    %9 = tpu.matmul %6, %8, %cst {dimension_numbers = #tpu.dot_dimension_numbers<[1], [1], [0], [0], [0, 0, 1, 0], [], []>} : vector<128x128xf32>, vector<128x128xf32>, vector<128x128xf32> -> vector<128x128xf32>
    %10 = arith.addf %7, %9 : vector<128x128xf32>
    %c0_8 = arith.constant 0 : index
    %c0_9 = arith.constant 0 : index
    %11 = vector.load %arg7[%c0_8, %c0_9] : memref<128x128xf32, #tpu.memory_space<vmem>>, vector<128x128xf32>
    tpu.vector_store %arg7[%c0_8, %c0_9], %10 {strides = array<i32>} : memref<128x128xf32, #tpu.memory_space<vmem>>, vector<128x128xf32>,
    %c0_i32_10 = arith.constant 0 : i32
    %12 = arith.cmpi eq, %arg2, %c0_i32_10 : i32
    %13 = arith.extui %12 : i1 to i32
    %c0_i32_11 = arith.constant 0 : i32
    %14 = arith.cmpi ne, %13, %c0_i32_11 : i32
    scf.if %14 {
      %c0_12 = arith.constant 0 : index
      %c0_13 = arith.constant 0 : index
      %15 = vector.load %arg7[%c0_12, %c0_13] : memref<128x128xf32, #tpu.memory_space<vmem>>, vector<128x128xf32>
      %c0_14 = arith.constant 0 : index
      %c0_15 = arith.constant 0 : index
      %16 = vector.load %arg6[%c0_14, %c0_15] : memref<128x128xf32, #tpu.memory_space<vmem>>, vector<128x128xf32>
      tpu.vector_store %arg6[%c0_14, %c0_15], %15 {strides = array<i32>} : memref<128x128xf32, #tpu.memory_space<vmem>>, vector<128x128xf32>,
    } else {
    }
    return
  }
  func.func @transform_0(%arg0: i32, %arg1: i32, %arg2: i32) -> (i32, i32) {
    %c0_i32 = arith.constant 0 : i32
    return %arg0, %arg2 : i32, i32
  }
  func.func @transform_1(%arg0: i32, %arg1: i32, %arg2: i32) -> (i32, i32) {
    %c0_i32 = arith.constant 0 : i32
    return %arg1, %arg2 : i32, i32
  }
  func.func @transform_2(%arg0: i32, %arg1: i32, %arg2: i32) -> (i32, i32) {
    %c0_i32 = arith.constant 0 : i32
    %c0_i32_0 = arith.constant 0 : i32
    return %c0_i32, %arg2 : i32, i32
  }
  func.func @transform_3(%arg0: i32, %arg1: i32, %arg2: i32) -> (i32, i32) {
    %c0_i32 = arith.constant 0 : i32
    return %arg0, %arg1 : i32, i32
  }
}

</mosaic_0001>

<llo_original>
// kernel: tpu_custom_call.1
$region0: #{tpu_custom_call.1}
  #allocation0 [shape = 'u32[]', space=smem, size = 0x4, offset = 0x4, fixed_abs, tag = 'smem constant byte address 0x4 - core index']
  #allocation1 [shape = 'u32[144,128]{1,0:T(1,128)}', space=vmem, size = 0x12000, scoped, tag = 'internal scratch']
  #allocation2 [shape = 'f32[128,128]{1,0:T(8,128)}', space=vmem, size = 0x10000, scoped, tag = 'scratch operand']
  %s0 = inlined_call_operand.hbm [shape: f32[128,128], index: 0, kind: input, shape index: {}]
  %s1 = inlined_call_operand.hbm [shape: f32[128,128], index: 1, kind: input, shape index: {}]
  %s2 = inlined_call_operand.vmem [shape: f32[1,128], index: 2, kind: input, shape index: {}]
  %s3 = inlined_call_operand.hbm [shape: f32[128,128], index: 3, kind: output, shape index: {}]
  %s4 = sld [smem:[#allocation0]]
  $region38: #{tpu_custom_call.1} parent=0
    _
  %s6 = ssub.s32 1, %s4
  %s7 = scalar_select 0, %s6, %s4
  $region1: #{tpu_custom_call.1} parent=0
    #allocation3 [shape = 'u8[65536]{0}', space=vmem, size = 0x10000, scoped, tag = 'input window, operand 0, single buffered']
    #allocation4 [shape = 's32[1]{0}', space=sflag, size = 0x4, scoped, tag = 'scoped memory for tpu_custom_call.1']
    #allocation5 [shape = 's32[1]{0}', space=sflag, size = 0x4, scoped, tag = 'scoped memory for tpu_custom_call.1']
    #allocation6 [shape = 'u8[65536]{0}', space=vmem, size = 0x10000, scoped, tag = 'input window, operand 1, single buffered']
    #allocation7 [shape = 's32[1]{0}', space=sflag, size = 0x4, scoped, tag = 'scoped memory for tpu_custom_call.1']
    #allocation8 [shape = 'u8[65536]{0}', space=vmem, size = 0x10000, scoped, tag = 'output window, operand 0, single buffered']
    %8 = vsyncpa [#allocation4], 0
    %9 = vsyncpa [#allocation7], 0
    %10 = vsyncpa [#allocation5], 0
    // Predicated region
    $region2: #{tpu_custom_call.1} parent=1 // pred_check
      _
    $region3: #{tpu_custom_call.1} parent=1 // pred_check_branch
      %12 = sbr.rel (0) target = $region5
    $region4: #{tpu_custom_call.1} parent=1 // pred_region
      %s14 = ssub.s32 2048, 2048
      %15 = vsyncadd [#allocation4], %s14
      %s16 = sshll.u32 [#allocation3], 4
      %s17 = int_to_ptr.vmem [resolvable:$true] %s16
      %22 = dma.hbm_to_vmem [thread:$0]  %s0, 2048, %s17, [#allocation4], 128, 128, 8
    $region5: #{tpu_custom_call.1} parent=1 // pred_fallthru
      _
    // Predicated region
    $region6: #{tpu_custom_call.1} parent=1 // pred_check
      _
    $region7: #{tpu_custom_call.1} parent=1 // pred_check_branch
      %24 = sbr.rel (0) target = $region9
    $region8: #{tpu_custom_call.1} parent=1 // pred_region
      %s26 = ssub.s32 2048, 2048
      %27 = vsyncadd [#allocation7], %s26
      %s28 = sshll.u32 [#allocation6], 4
      %s29 = int_to_ptr.vmem [resolvable:$true] %s28
      %34 = dma.hbm_to_vmem [thread:$0]  %s1, 2048, %s29, [#allocation7], 128, 128, 8
    $region9: #{tpu_custom_call.1} parent=1 // pred_fallthru
      _
    // Predicated region
    $region10: #{tpu_custom_call.1} parent=1 // pred_check
      _
    $region11: #{tpu_custom_call.1} parent=1 // pred_check_branch
      %36 = sbr.rel (0) target = $region13
    $region12: #{tpu_custom_call.1} parent=1 // pred_region
      _
    $region13: #{tpu_custom_call.1} parent=1 // pred_fallthru
      _
    // Predicated region
    $region14: #{tpu_custom_call.1} parent=1 // pred_check
      _
    $region15: #{tpu_custom_call.1} parent=1 // pred_check_branch
      %38 = sbr.rel (0) target = $region17
    $region16: #{tpu_custom_call.1} parent=1 // pred_region
      %39 = dma.done [#allocation4], 2048
    $region17: #{tpu_custom_call.1} parent=1 // pred_fallthru
      _
    // Predicated region
    $region18: #{tpu_custom_call.1} parent=1 // pred_check
      _
    $region19: #{tpu_custom_call.1} parent=1 // pred_check_branch
      %41 = sbr.rel (0) target = $region21
    $region20: #{tpu_custom_call.1} parent=1 // pred_region
      %42 = dma.done [#allocation7], 2048
    $region21: #{tpu_custom_call.1} parent=1 // pred_fallthru
      _
    %p43 = scmp.eq.s32.totalorder 0, 0
    // Predicated region
    $region22: #{tpu_custom_call.1} parent=1 // pred_check
      %p44 = pneg %p43
    $region23: #{tpu_custom_call.1} parent=1 // pred_check_branch
      %46 = sbr.rel (%p44) target = $region25
    $region24: #{tpu_custom_call.1} parent=1 // pred_region
      %47 = vst [vmem:[#allocation2] sm:$0xff] 0.0
      %48 = vst [vmem:[#allocation2 + $0x8] sm:$0xff] 0.0
      %49 = vst [vmem:[#allocation2 + $0x10] sm:$0xff] 0.0
      %50 = vst [vmem:[#allocation2 + $0x18] sm:$0xff] 0.0
      %51 = vst [vmem:[#allocation2 + $0x20] sm:$0xff] 0.0
      %52 = vst [vmem:[#allocation2 + $0x28] sm:$0xff] 0.0
      %53 = vst [vmem:[#allocation2 + $0x30] sm:$0xff] 0.0
      %54 = vst [vmem:[#allocation2 + $0x38] sm:$0xff] 0.0
      %55 = vst [vmem:[#allocation2 + $0x40] sm:$0xff] 0.0
      %56 = vst [vmem:[#allocation2 + $0x48] sm:$0xff] 0.0
      %57 = vst [vmem:[#allocation2 + $0x50] sm:$0xff] 0.0
      %58 = vst [vmem:[#allocation2 + $0x58] sm:$0xff] 0.0
      %59 = vst [vmem:[#allocation2 + $0x60] sm:$0xff] 0.0
      %60 = vst [vmem:[#allocation2 + $0x68] sm:$0xff] 0.0
      %61 = vst [vmem:[#allocation2 + $0x70] sm:$0xff] 0.0
      %62 = vst [vmem:[#allocation2 + $0x78] sm:$0xff] 0.0
    $region25: #{tpu_custom_call.1} parent=1 // pred_fallthru
      _
    %v63 = vld [vmem:[#allocation3] sm:$0xff]
    %v64 = vld [vmem:[#allocation3 + $0x8] sm:$0xff]
    %v65 = vld [vmem:[#allocation3 + $0x10] sm:$0xff]
    %v66 = vld [vmem:[#allocation3 + $0x18] sm:$0xff]
    %v67 = vld [vmem:[#allocation3 + $0x20] sm:$0xff]
    %v68 = vld [vmem:[#allocation3 + $0x28] sm:$0xff]
    %v69 = vld [vmem:[#allocation3 + $0x30] sm:$0xff]
    %v70 = vld [vmem:[#allocation3 + $0x38] sm:$0xff]
    %v71 = vld [vmem:[#allocation3 + $0x40] sm:$0xff]
    %v72 = vld [vmem:[#allocation3 + $0x48] sm:$0xff]
    %v73 = vld [vmem:[#allocation3 + $0x50] sm:$0xff]
    %v74 = vld [vmem:[#allocation3 + $0x58] sm:$0xff]
    %v75 = vld [vmem:[#allocation3 + $0x60] sm:$0xff]
    %v76 = vld [vmem:[#allocation3 + $0x68] sm:$0xff]
    %v77 = vld [vmem:[#allocation3 + $0x70] sm:$0xff]
    %v78 = vld [vmem:[#allocation3 + $0x78] sm:$0xff]
    %v79 = vld [vmem:[%s2] sm:$0x1]
    %v81 = vlaneseq
    %v82 = vshrl.u32 %v81, 7
    %v83 = vsub.s32 0, %v82
    %v84 = vrot.slane %v79, %v83
    %v86 = vmul.f32 %v63, %v84
    %v87 = vmul.f32 %v64, %v84
    %v88 = vmul.f32 %v65, %v84
    %v89 = vmul.f32 %v66, %v84
    %v90 = vmul.f32 %v67, %v84
    %v91 = vmul.f32 %v68, %v84
    %v92 = vmul.f32 %v69, %v84
    %v93 = vmul.f32 %v70, %v84
    %v94 = vmul.f32 %v71, %v84
    %v95 = vmul.f32 %v72, %v84
    %v96 = vmul.f32 %v73, %v84
    %v97 = vmul.f32 %v74, %v84
    %v98 = vmul.f32 %v75, %v84
    %v99 = vmul.f32 %v76, %v84
    %v100 = vmul.f32 %v77, %v84
    %v101 = vmul.f32 %v78, %v84
    %v102 = vld [vmem:[#allocation2] sm:$0xff]
    %v103 = vld [vmem:[#allocation2 + $0x8] sm:$0xff]
    %v104 = vld [vmem:[#allocation2 + $0x10] sm:$0xff]
    %v105 = vld [vmem:[#allocation2 + $0x18] sm:$0xff]
    %v106 = vld [vmem:[#allocation2 + $0x20] sm:$0xff]
    %v107 = vld [vmem:[#allocation2 + $0x28] sm:$0xff]
    %v108 = vld [vmem:[#allocation2 + $0x30] sm:$0xff]
    %v109 = vld [vmem:[#allocation2 + $0x38] sm:$0xff]
    %v110 = vld [vmem:[#allocation2 + $0x40] sm:$0xff]
    %v111 = vld [vmem:[#allocation2 + $0x48] sm:$0xff]
    %v112 = vld [vmem:[#allocation2 + $0x50] sm:$0xff]
    %v113 = vld [vmem:[#allocation2 + $0x58] sm:$0xff]
    %v114 = vld [vmem:[#allocation2 + $0x60] sm:$0xff]
    %v115 = vld [vmem:[#allocation2 + $0x68] sm:$0xff]
    %v116 = vld [vmem:[#allocation2 + $0x70] sm:$0xff]
    %v117 = vld [vmem:[#allocation2 + $0x78] sm:$0xff]
    %v118 = vld [vmem:[#allocation6] sm:$0xff]
    %v119 = vld [vmem:[#allocation6 + $0x8] sm:$0xff]
    %v120 = vld [vmem:[#allocation6 + $0x10] sm:$0xff]
    %v121 = vld [vmem:[#allocation6 + $0x18] sm:$0xff]
    %v122 = vld [vmem:[#allocation6 + $0x20] sm:$0xff]
    %v123 = vld [vmem:[#allocation6 + $0x28] sm:$0xff]
    %v124 = vld [vmem:[#allocation6 + $0x30] sm:$0xff]
    %v125 = vld [vmem:[#allocation6 + $0x38] sm:$0xff]
    %v126 = vld [vmem:[#allocation6 + $0x40] sm:$0xff]
    %v127 = vld [vmem:[#allocation6 + $0x48] sm:$0xff]
    %v128 = vld [vmem:[#allocation6 + $0x50] sm:$0xff]
    %v129 = vld [vmem:[#allocation6 + $0x58] sm:$0xff]
    %v130 = vld [vmem:[#allocation6 + $0x60] sm:$0xff]
    %v131 = vld [vmem:[#allocation6 + $0x68] sm:$0xff]
    %v132 = vld [vmem:[#allocation6 + $0x70] sm:$0xff]
    %v133 = vld [vmem:[#allocation6 + $0x78] sm:$0xff]
    %134 = vmatprep.subr.mxu0 0.0
    %135 = vmatpush1.xpose.msra.mxu0 %v118
    %136 = vmatprep.subr.mxu0 0.0
    %137 = vmatpush1.xpose.msra.mxu0 %v119
    %138 = vmatprep.subr.mxu0 0.0
    %139 = vmatpush1.xpose.msra.mxu0 %v120
    %140 = vmatprep.subr.mxu0 0.0
    %141 = vmatpush1.xpose.msra.mxu0 %v121
    %142 = vmatprep.subr.mxu0 0.0
    %143 = vmatpush1.xpose.msra.mxu0 %v122
    %144 = vmatprep.subr.mxu0 0.0
    %145 = vmatpush1.xpose.msra.mxu0 %v123
    %146 = vmatprep.subr.mxu0 0.0
    %147 = vmatpush1.xpose.msra.mxu0 %v124
    %148 = vmatprep.subr.mxu0 0.0
    %149 = vmatpush1.xpose.msra.mxu0 %v125
    %150 = vmatprep.subr.mxu0 0.0
    %151 = vmatpush1.xpose.msra.mxu0 %v126
    %152 = vmatprep.subr.mxu0 0.0
    %153 = vmatpush1.xpose.msra.mxu0 %v127
    %154 = vmatprep.subr.mxu0 0.0
    %155 = vmatpush1.xpose.msra.mxu0 %v128
    %156 = vmatprep.subr.mxu0 0.0
    %157 = vmatpush1.xpose.msra.mxu0 %v129
    %158 = vmatprep.subr.mxu0 0.0
    %159 = vmatpush1.xpose.msra.mxu0 %v130
    %160 = vmatprep.subr.mxu0 0.0
    %161 = vmatpush1.xpose.msra.mxu0 %v131
    %162 = vmatprep.subr.mxu0 0.0
    %163 = vmatpush1.xpose.msra.mxu0 %v132
    %164 = vmatprep.subr.mxu0 0.0
    %165 = vmatpush1.xpose.msra.mxu0 %v133
    %166 = vmatprep.subr.mxu0 0.0
    %167 = vmatpush1.xpose.msra.mxu0 0.0
    %168 = vmatprep.subr.mxu0 0.0
    %169 = vmatpush1.xpose.msra.mxu0 0.0
    %170 = vmatprep.subr.mxu0 0.0
    %171 = vmatpush1.xpose.msra.mxu0 0.0
    %172 = vmatprep.subr.mxu0 0.0
    %173 = vmatpush1.xpose.msra.mxu0 0.0
    %174 = vmatprep.subr.mxu0 0.0
    %175 = vmatpush1.xpose.msra.mxu0 0.0
    %176 = vmatprep.subr.mxu0 0.0
    %177 = vmatpush1.xpose.msra.mxu0 0.0
    %178 = vmatprep.subr.mxu0 0.0
    %179 = vmatpush1.xpose.msra.mxu0 0.0
    %180 = vmatprep.subr.mxu0 0.0
    %181 = vmatpush1.xpose.msra.mxu0 0.0
    %182 = vmatprep.subr.mxu0 0.0
    %183 = vmatpush1.xpose.msra.mxu0 0.0
    %184 = vmatprep.subr.mxu0 0.0
    %185 = vmatpush1.xpose.msra.mxu0 0.0
    %186 = vmatprep.subr.mxu0 0.0
    %187 = vmatpush1.xpose.msra.mxu0 0.0
    %188 = vmatprep.subr.mxu0 0.0
    %189 = vmatpush1.xpose.msra.mxu0 0.0
    %190 = vmatprep.subr.mxu0 0.0
    %191 = vmatpush1.xpose.msra.mxu0 0.0
    %192 = vmatprep.subr.mxu0 0.0
    %193 = vmatpush1.xpose.msra.mxu0 0.0
    %194 = vmatprep.subr.mxu0 0.0
    %195 = vmatpush1.xpose.msra.mxu0 0.0
    %196 = vmatprep.subr.mxu0 0.0
    %197 = vmatpush1.xpose.msra.mxu0 0.0
    %198 = vmatprep.mubr.f32.mxu0 0.0
    %199 = vmatmul.mubr.f32.gmra.mrb[0].mxu0 %v86
    %v200 = vpop.f32.mrb[0].mxu0
    %v201 = vadd.f32 0.0, %v200
    %v202 = vpop.f32.mrb[0].mxu0
    %203 = vmatprep.mubr.f32.mxu0 0.0
    %204 = vmatmul.mubr.f32.gmra.mrb[0].mxu0 %v87
    %v205 = vpop.f32.mrb[0].mxu0
    %v206 = vadd.f32 0.0, %v205
    %v207 = vpop.f32.mrb[0].mxu0
    %208 = vmatprep.mubr.f32.mxu0 0.0
    %209 = vmatmul.mubr.f32.gmra.mrb[0].mxu0 %v88
    %v210 = vpop.f32.mrb[0].mxu0
    %v211 = vadd.f32 0.0, %v210
    %v212 = vpop.f32.mrb[0].mxu0
    %213 = vmatprep.mubr.f32.mxu0 0.0
    %214 = vmatmul.mubr.f32.gmra.mrb[0].mxu0 %v89
    %v215 = vpop.f32.mrb[0].mxu0
    %v216 = vadd.f32 0.0, %v215
    %v217 = vpop.f32.mrb[0].mxu0
    %218 = vmatprep.mubr.f32.mxu0 0.0
    %219 = vmatmul.mubr.f32.gmra.mrb[0].mxu0 %v90
    %v220 = vpop.f32.mrb[0].mxu0
    %v221 = vadd.f32 0.0, %v220
    %v222 = vpop.f32.mrb[0].mxu0
    %223 = vmatprep.mubr.f32.mxu0 0.0
    %224 = vmatmul.mubr.f32.gmra.mrb[0].mxu0 %v91
    %v225 = vpop.f32.mrb[0].mxu0
    %v226 = vadd.f32 0.0, %v225
    %v227 = vpop.f32.mrb[0].mxu0
    %228 = vmatprep.mubr.f32.mxu0 0.0
    %229 = vmatmul.mubr.f32.gmra.mrb[0].mxu0 %v92
    %v230 = vpop.f32.mrb[0].mxu0
    %v231 = vadd.f32 0.0, %v230
    %v232 = vpop.f32.mrb[0].mxu0
    %233 = vmatprep.mubr.f32.mxu0 0.0
    %234 = vmatmul.mubr.f32.gmra.mrb[0].mxu0 %v93
    %v235 = vpop.f32.mrb[0].mxu0
    %v236 = vadd.f32 0.0, %v235
    %v237 = vpop.f32.mrb[0].mxu0
    %238 = vmatprep.mubr.f32.mxu0 0.0
    %239 = vmatmul.mubr.f32.gmra.mrb[0].mxu0 %v94
    %v240 = vpop.f32.mrb[0].mxu0
    %v241 = vadd.f32 0.0, %v240
    %v242 = vpop.f32.mrb[0].mxu0
    %243 = vmatprep.mubr.f32.mxu0 0.0
    %244 = vmatmul.mubr.f32.gmra.mrb[0].mxu0 %v95
    %v245 = vpop.f32.mrb[0].mxu0
    %v246 = vadd.f32 0.0, %v245
    %v247 = vpop.f32.mrb[0].mxu0
    %248 = vmatprep.mubr.f32.mxu0 0.0
    %249 = vmatmul.mubr.f32.gmra.mrb[0].mxu0 %v96
    %v250 = vpop.f32.mrb[0].mxu0
    %v251 = vadd.f32 0.0, %v250
    %v252 = vpop.f32.mrb[0].mxu0
    %253 = vmatprep.mubr.f32.mxu0 0.0
    %254 = vmatmul.mubr.f32.gmra.mrb[0].mxu0 %v97
    %v255 = vpop.f32.mrb[0].mxu0
    %v256 = vadd.f32 0.0, %v255
    %v257 = vpop.f32.mrb[0].mxu0
    %258 = vmatprep.mubr.f32.mxu0 0.0
    %259 = vmatmul.mubr.f32.gmra.mrb[0].mxu0 %v98
    %v260 = vpop.f32.mrb[0].mxu0
    %v261 = vadd.f32 0.0, %v260
    %v262 = vpop.f32.mrb[0].mxu0
    %263 = vmatprep.mubr.f32.mxu0 0.0
    %264 = vmatmul.mubr.f32.gmra.mrb[0].mxu0 %v99
    %v265 = vpop.f32.mrb[0].mxu0
    %v266 = vadd.f32 0.0, %v265
    %v267 = vpop.f32.mrb[0].mxu0
    %268 = vmatprep.mubr.f32.mxu0 0.0
    %269 = vmatmul.mubr.f32.gmra.mrb[0].mxu0 %v100
    %v270 = vpop.f32.mrb[0].mxu0
    %v271 = vadd.f32 0.0, %v270
    %v272 = vpop.f32.mrb[0].mxu0
    %273 = vmatprep.mubr.f32.mxu0 0.0
    %274 = vmatmul.mubr.f32.gmra.mrb[0].mxu0 %v101
    %v275 = vpop.f32.mrb[0].mxu0
    %v276 = vadd.f32 0.0, %v275
    %v277 = vpop.f32.mrb[0].mxu0
    %278 = vdwg.mxu0
    %v279 = vadd.f32 %v102, %v201
    %v280 = vadd.f32 %v103, %v206
    %v281 = vadd.f32 %v104, %v211
    %v282 = vadd.f32 %v105, %v216
    %v283 = vadd.f32 %v106, %v221
    %v284 = vadd.f32 %v107, %v226
    %v285 = vadd.f32 %v108, %v231
    %v286 = vadd.f32 %v109, %v236
    %v287 = vadd.f32 %v110, %v241
    %v288 = vadd.f32 %v111, %v246
    %v289 = vadd.f32 %v112, %v251
    %v290 = vadd.f32 %v113, %v256
    %v291 = vadd.f32 %v114, %v261
    %v292 = vadd.f32 %v115, %v266
    %v293 = vadd.f32 %v116, %v271
    %v294 = vadd.f32 %v117, %v276
    %295 = vst [vmem:[#allocation2] sm:$0xff] %v279
    %296 = vst [vmem:[#allocation2 + $0x8] sm:$0xff] %v280
    %297 = vst [vmem:[#allocation2 + $0x10] sm:$0xff] %v281
    %298 = vst [vmem:[#allocation2 + $0x18] sm:$0xff] %v282
    %299 = vst [vmem:[#allocation2 + $0x20] sm:$0xff] %v283
    %300 = vst [vmem:[#allocation2 + $0x28] sm:$0xff] %v284
    %301 = vst [vmem:[#allocation2 + $0x30] sm:$0xff] %v285
    %302 = vst [vmem:[#allocation2 + $0x38] sm:$0xff] %v286
    %303 = vst [vmem:[#allocation2 + $0x40] sm:$0xff] %v287
    %304 = vst [vmem:[#allocation2 + $0x48] sm:$0xff] %v288
    %305 = vst [vmem:[#allocation2 + $0x50] sm:$0xff] %v289
    %306 = vst [vmem:[#allocation2 + $0x58] sm:$0xff] %v290
    %307 = vst [vmem:[#allocation2 + $0x60] sm:$0xff] %v291
    %308 = vst [vmem:[#allocation2 + $0x68] sm:$0xff] %v292
    %309 = vst [vmem:[#allocation2 + $0x70] sm:$0xff] %v293
    %310 = vst [vmem:[#allocation2 + $0x78] sm:$0xff] %v294
    // Predicated region
    $region26: #{tpu_custom_call.1} parent=1 // pred_check
      %p311 = pneg %p43
    $region27: #{tpu_custom_call.1} parent=1 // pred_check_branch
      %313 = sbr.rel (%p311) target = $region29
    $region28: #{tpu_custom_call.1} parent=1 // pred_region
      %v314 = vld [vmem:[#allocation2] sm:$0xff]
      %v315 = vld [vmem:[#allocation2 + $0x8] sm:$0xff]
      %v316 = vld [vmem:[#allocation2 + $0x10] sm:$0xff]
      %v317 = vld [vmem:[#allocation2 + $0x18] sm:$0xff]
      %v318 = vld [vmem:[#allocation2 + $0x20] sm:$0xff]
      %v319 = vld [vmem:[#allocation2 + $0x28] sm:$0xff]
      %v320 = vld [vmem:[#allocation2 + $0x30] sm:$0xff]
      %v321 = vld [vmem:[#allocation2 + $0x38] sm:$0xff]
      %v322 = vld [vmem:[#allocation2 + $0x40] sm:$0xff]
      %v323 = vld [vmem:[#allocation2 + $0x48] sm:$0xff]
      %v324 = vld [vmem:[#allocation2 + $0x50] sm:$0xff]
      %v325 = vld [vmem:[#allocation2 + $0x58] sm:$0xff]
      %v326 = vld [vmem:[#allocation2 + $0x60] sm:$0xff]
      %v327 = vld [vmem:[#allocation2 + $0x68] sm:$0xff]
      %v328 = vld [vmem:[#allocation2 + $0x70] sm:$0xff]
      %v329 = vld [vmem:[#allocation2 + $0x78] sm:$0xff]
      %330 = vst [vmem:[#allocation8] sm:$0xff] %v314
      %331 = vst [vmem:[#allocation8 + $0x8] sm:$0xff] %v315
      %332 = vst [vmem:[#allocation8 + $0x10] sm:$0xff] %v316
      %333 = vst [vmem:[#allocation8 + $0x18] sm:$0xff] %v317
      %334 = vst [vmem:[#allocation8 + $0x20] sm:$0xff] %v318
      %335 = vst [vmem:[#allocation8 + $0x28] sm:$0xff] %v319
      %336 = vst [vmem:[#allocation8 + $0x30] sm:$0xff] %v320
      %337 = vst [vmem:[#allocation8 + $0x38] sm:$0xff] %v321
      %338 = vst [vmem:[#allocation8 + $0x40] sm:$0xff] %v322
      %339 = vst [vmem:[#allocation8 + $0x48] sm:$0xff] %v323
      %340 = vst [vmem:[#allocation8 + $0x50] sm:$0xff] %v324
      %341 = vst [vmem:[#allocation8 + $0x58] sm:$0xff] %v325
      %342 = vst [vmem:[#allocation8 + $0x60] sm:$0xff] %v326
      %343 = vst [vmem:[#allocation8 + $0x68] sm:$0xff] %v327
      %344 = vst [vmem:[#allocation8 + $0x70] sm:$0xff] %v328
      %345 = vst [vmem:[#allocation8 + $0x78] sm:$0xff] %v329
    $region29: #{tpu_custom_call.1} parent=1 // pred_fallthru
      _
    // Predicated region
    $region30: #{tpu_custom_call.1} parent=1 // pred_check
      _
    $region31: #{tpu_custom_call.1} parent=1 // pred_check_branch
      %347 = sbr.rel (0) target = $region33
    $region32: #{tpu_custom_call.1} parent=1 // pred_region
      %s349 = ssub.s32 2048, 2048
      %350 = vsyncadd [#allocation5], %s349
      %s351 = sshll.u32 [#allocation8], 4
      %s352 = int_to_ptr.vmem [resolvable:$true] %s351
      %357 = dma.vmem_to_hbm [thread:$0]  %s352, 2048, %s3, [#allocation5], 128, 128, 8
    $region33: #{tpu_custom_call.1} parent=1 // pred_fallthru
      _
    // Predicated region
    $region34: #{tpu_custom_call.1} parent=1 // pred_check
      _
    $region35: #{tpu_custom_call.1} parent=1 // pred_check_branch
      %359 = sbr.rel (0) target = $region37
    $region36: #{tpu_custom_call.1} parent=1 // pred_region
      %360 = dma.done [#allocation5], 2048
    $region37: #{tpu_custom_call.1} parent=1 // pred_fallthru
      _
    %361 = vsyncpa [#allocation4], 1
    %362 = vsyncpa [#allocation7], 1
    %363 = vsyncpa [#allocation5], 1

</llo_original>
